<compile_context>
chip_gen: v6e
topology: v6e:2x2x1
jax: 0.10.0
libtpu: 0.0.40
codegen_flags: <defaults>
</compile_context>

<pallas_src>
import math

import jax
import jax.numpy as jnp
from jax import lax
from jax.experimental import pallas as pl
from jax.experimental.pallas import tpu as pltpu

GAMMA = 2.0   # module hard-codes gamma = 2; handled as an explicit square.
ALPHA = 0.25  # folded into the wrapper's final scale.


def _cdiv(a, b):
    return -(-a // b)


def _sublane_granularity(dtype):
    # (8,128) tiling for 4-byte, (16,128) for 2-byte, (32,128) for 1-byte.
    itemsize = jnp.dtype(dtype).itemsize
    return 8 * max(1, 4 // itemsize)


def _make_focal_kernel(rows, tm, rows_blocks, binary_targets):
    """rows/tm/rows_blocks are static Python ints closed over by the kernel."""

    def kernel(x_ref, t_ref, out_ref):
        si = pl.program_id(1)

        @pl.when(si == 0)
        def _init():
            out_ref[...] = jnp.zeros_like(out_ref)

        # Unclamped global block index.  The index_map clamps to the last
        # valid block, so fully out-of-range grid steps re-read valid data;
        # their contribution is masked to exactly zero below.
        bi = pl.program_id(0) * pl.num_programs(1) + si

        x = x_ref[...].astype(jnp.float32)   # probabilities
        t = t_ref[...].astype(jnp.float32)   # targets

        # binary_cross_entropy with PyTorch's log clamp at -100.
        log_x = jnp.maximum(jnp.log(x), -100.0)
        log_1mx = jnp.maximum(jnp.log(1.0 - x), -100.0)

        if binary_targets:
            # Hard 0/1 targets: selects replace exp(-bce) -> 2 EUP ops/elt.
            pos = t > 0.5
            bce = -jnp.where(pos, log_x, log_1mx)
            pt = jnp.where(pos, x, 1.0 - x)
        else:
            # General (soft-target) path.
            bce = -(log_1mx + t * (log_x - log_1mx))
            pt = jnp.exp(-bce)

        omp = 1.0 - pt
        # gamma == 2 -> square; alpha applied once in the wrapper.
        f = (omp * omp) * bce

        def fold(v):
            # (TM, TN) -> (8, TN): pure vreg-wise VPU adds (whole (8,128)
            # tiles, no XLU, no per-step scalar store).
            return v.reshape(tm // 8, 8, v.shape[-1]).sum(axis=0)

        last = rows_blocks - 1

        @pl.when(bi < last)
        def _full_block():
            out_ref[...] += fold(f)

        @pl.when(bi >= last)
        def _tail_block():
            # Partial (or clamped, fully OOB) block: zero invalid rows AFTER
            # the full focal expression -- jnp.where is a select, so NaN/Inf
            # garbage from the OOB region of the partial block cannot leak.
            row = lax.broadcasted_iota(jnp.int32, f.shape, 0)
            valid = (bi * tm + row) < rows
            out_ref[...] += fold(jnp.where(valid, f, 0.0))

    return kernel


def focal_loss_batchproof2(inputs, targets, *, tn_max=512, tm_max=1024, p=2,
                           min_steps=8, binary_targets=False):
    """(1/B) * sum_i mean_i(alpha * (1-pt)^2 * BCE) -- matches the PyTorch module.

    inputs: probabilities, shape (B, C, D, H, W); targets: same shape.
    Inputs are consumed in their native dtype; the f32 cast happens inside
    the kernel, so the wrapper adds no extra HBM passes in the common case.
    """
    assert inputs.shape == targets.shape
    assert tn_max % 128 == 0 and p >= 1 and tm_max >= 8
    total = int(math.prod(inputs.shape))      # B*C*D*H*W, static

    x = inputs.reshape(-1)
    t = targets.reshape(-1)

    # Widest lane tile (multiple of 128) that divides the element count ->
    # the 2-D reshape below is a free bitcast (no padded HBM copy).
    tn = 0
    for k in range(tn_max // 128, 0, -1):
        if total % (128 * k) == 0:
            tn = 128 * k
            break
    n_elems = total
    if tn == 0:
        # Rare fallback (element count not a multiple of 128): pad with
        # (x=1, t=1), which contributes exactly zero focal loss.
        # TODO(synk): this fallback costs one extra HBM pass; the common
        # 128-divisible case above avoids any copy.
        tn = 128
        pad = _cdiv(total, 128) * 128 - total
        x = jnp.concatenate([x, jnp.ones((pad,), x.dtype)])
        t = jnp.concatenate([t, jnp.ones((pad,), t.dtype)])
        n_elems = total + pad

    rows = n_elems // tn

    # Sublane granularity for the narrowest input dtype in play.
    min_tm = max(_sublane_granularity(x.dtype), _sublane_granularity(t.dtype), 8)
    tm_cap = max(min_tm, (tm_max // min_tm) * min_tm)
    tm = max(min_tm, min(tm_cap, _cdiv(rows, min_tm) * min_tm))
    # Keep >= min_steps grid steps per parallel chunk (warm DMA pipeline per
    # TensorCore): shrink TM before shrinking the step count.
    while tm > min_tm and _cdiv(_cdiv(rows, tm), p) < min_steps:
        tm = max(min_tm, ((tm // 2) // min_tm) * min_tm)

    rows_blocks = _cdiv(rows, tm)
    p_eff = max(1, min(p, rows_blocks))
    steps = _cdiv(rows_blocks, p_eff)
    last_block = rows_blocks - 1

    x2 = x.reshape(rows, tn)
    t2 = t.reshape(rows, tn)

    def in_map(pi, si):
        # Clamp so every DMA window overlaps the array; fully OOB grid steps
        # re-read the last block and are masked to zero inside the kernel.
        return (jnp.minimum(pi * steps + si, last_block), 0)

    kernel = _make_focal_kernel(rows, tm, rows_blocks, binary_targets)

    cost = pl.CostEstimate(
        flops=int(10 * total),
        transcendentals=int((2 if binary_targets else 3) * total),
        bytes_accessed=int(x2.size * x2.dtype.itemsize
                           + t2.size * t2.dtype.itemsize
                           + p_eff * 8 * tn * 4),
    )

    partials = pl.pallas_call(
        kernel,
        out_shape=jax.ShapeDtypeStruct((p_eff * 8, tn), jnp.float32),
        grid_spec=pltpu.PrefetchScalarGridSpec(
            num_scalar_prefetch=0,
            grid=(p_eff, steps),
            in_specs=[
                pl.BlockSpec((tm, tn), in_map),
                pl.BlockSpec((tm, tn), in_map),
            ],
            out_specs=pl.BlockSpec((8, tn), lambda pi, si: (pi, 0)),
        ),
        compiler_params=pltpu.CompilerParams(
            dimension_semantics=("parallel", "arbitrary")),
        cost_estimate=cost,
    )(x2, t2)

    # Global sum / total == (1/B) * sum of per-batch means (equal row lengths).
    # alpha is applied once here instead of per element in the kernel.
    return (jnp.sum(partials) * (ALPHA / total)).astype(jnp.float32)


def _reference(inputs, targets):
    B = inputs.shape[0]
    x = inputs.reshape(B, -1).astype(jnp.float32)
    t = targets.reshape(B, -1).astype(jnp.float32)
    log_x = jnp.maximum(jnp.log(x), -100.0)
    log_1mx = jnp.maximum(jnp.log(1.0 - x), -100.0)
    bce = -(t * log_x + (1.0 - t) * log_1mx)
    pt = jnp.exp(-bce)
    f = ALPHA * (1.0 - pt) ** GAMMA * bce
    return jnp.mean(jnp.mean(f, axis=-1))


if __name__ == "__main__":
    key = jax.random.PRNGKey(0)
    k1, k2 = jax.random.split(key)

    # Small 5-D shapes consistent with the module: (B, C, D, H, W).
    B, C, D, H, W = 2, 1, 16, 16, 24          # total = 12288 elements

    logits = jax.random.normal(k1, (B, C, D, H, W), dtype=jnp.float32)
    probs = jax.nn.sigmoid(logits)            # BCE expects probabilities
    targets = (jax.random.uniform(k2, (B, C, D, H, W)) > 0.5).astype(jnp.float32)

    ref = _reference(probs, targets)

    # 1) f32 inputs, general (soft-target) path; exercises the clamped /
    #    masked tail grid steps and multi-step accumulation.
    out = jax.block_until_ready(focal_loss_batchproof2(probs, targets))
    assert jnp.allclose(out, ref, rtol=1e-4, atol=1e-6), (out, ref)

    # 2) Native bf16 probabilities + binary-target fast path (no exp).
    probs_bf16 = probs.astype(jnp.bfloat16)
    ref_bf16 = _reference(probs_bf16.astype(jnp.float32), targets)
    out_bf16 = jax.block_until_ready(
        focal_loss_batchproof2(probs_bf16, targets, binary_targets=True))
    assert jnp.allclose(out_bf16, ref_bf16, rtol=1e-3, atol=1e-6), (out_bf16, ref_bf16)

    # 3) Element count not a multiple of 128 -> rare zero-loss padding fallback.
    B2, C2, D2, H2, W2 = 2, 1, 3, 5, 7        # total = 210
    logits2 = jax.random.normal(k1, (B2, C2, D2, H2, W2), dtype=jnp.float32)
    probs2 = jax.nn.sigmoid(logits2)
    targets2 = (jax.random.uniform(k2, (B2, C2, D2, H2, W2)) > 0.5).astype(jnp.float32)
    ref2 = _reference(probs2, targets2)
    out2 = jax.block_until_ready(focal_loss_batchproof2(probs2, targets2))
    assert jnp.allclose(out2, ref2, rtol=1e-4, atol=1e-6), (out2, ref2)

    print("KERNEL_OK")
</pallas_src>

<mosaic_0001>
module attributes {stable_mosaic.version = 11 : i64} {
  func.func @kernel(%arg0: i32, %arg1: i32, %arg2: memref<8x512xf32, #tpu.memory_space<vmem>>, %arg3: memref<8x512xf32, #tpu.memory_space<vmem>>, %arg4: memref<8x512xf32, #tpu.memory_space<vmem>>) attributes {dimension_semantics = [#tpu.dimension_semantics<parallel>, #tpu.dimension_semantics<arbitrary>], iteration_bounds = array<i64: 2, 2>, scalar_prefetch = 0 : i64, scratch_operands = 0 : i64, tpu.core_type = #tpu.core_type<tc>, window_params = [{transform_indices = @transform_0, window_bounds = array<i64: 8, 512>}, {transform_indices = @transform_1, window_bounds = array<i64: 8, 512>}, {transform_indices = @transform_2, window_bounds = array<i64: 8, 512>}]} {
    %c0_i32 = arith.constant 0 : i32
    %0 = arith.cmpi eq, %arg1, %c0_i32 : i32
    %1 = arith.extui %0 : i1 to i32
    %c0_i32_0 = arith.constant 0 : i32
    %2 = arith.cmpi ne, %1, %c0_i32_0 : i32
    scf.if %2 {
      %cst_13 = arith.constant 0.000000e+00 : f32
      %33 = vector.broadcast %cst_13 : f32 to vector<8x512xf32>
      %c0_14 = arith.constant 0 : index
      %c0_15 = arith.constant 0 : index
      %34 = vector.load %arg4[%c0_14, %c0_15] : memref<8x512xf32, #tpu.memory_space<vmem>>, vector<8x512xf32>
      tpu.vector_store %arg4[%c0_14, %c0_15], %33 {strides = array<i32>} : memref<8x512xf32, #tpu.memory_space<vmem>>, vector<8x512xf32>,
    } else {
    }
    %c2_i32 = arith.constant 2 : i32
    %3 = arith.muli %arg0, %c2_i32 : i32
    %4 = arith.addi %3, %arg1 : i32
    %c0 = arith.constant 0 : index
    %c0_1 = arith.constant 0 : index
    %5 = vector.load %arg2[%c0, %c0_1] : memref<8x512xf32, #tpu.memory_space<vmem>>, vector<8x512xf32>
    %c0_2 = arith.constant 0 : index
    %c0_3 = arith.constant 0 : index
    %6 = vector.load %arg3[%c0_2, %c0_3] : memref<8x512xf32, #tpu.memory_space<vmem>>, vector<8x512xf32>
    %7 = math.log %5 : vector<8x512xf32>
    %cst = arith.constant -1.000000e+02 : f32
    %8 = vector.broadcast %cst : f32 to vector<8x512xf32>
    %9 = arith.maximumf %7, %8 : vector<8x512xf32>
    %cst_4 = arith.constant 1.000000e+00 : f32
    %10 = vector.broadcast %cst_4 : f32 to vector<8x512xf32>
    %11 = arith.subf %10, %5 : vector<8x512xf32>
    %12 = math.log %11 : vector<8x512xf32>
    %cst_5 = arith.constant -1.000000e+02 : f32
    %13 = vector.broadcast %cst_5 : f32 to vector<8x512xf32>
    %14 = arith.maximumf %12, %13 : vector<8x512xf32>
    %15 = arith.subf %9, %14 : vector<8x512xf32>
    %16 = arith.mulf %6, %15 : vector<8x512xf32>
    %17 = arith.addf %14, %16 : vector<8x512xf32>
    %cst_6 = arith.constant 0.000000e+00 : f32
    %18 = vector.broadcast %cst_6 : f32 to vector<8x512xf32>
    %19 = arith.subf %18, %17 : vector<8x512xf32>
    %cst_7 = arith.constant 0.000000e+00 : f32
    %20 = vector.broadcast %cst_7 : f32 to vector<8x512xf32>
    %21 = arith.subf %20, %19 : vector<8x512xf32>
    %22 = math.exp %21 : vector<8x512xf32>
    %cst_8 = arith.constant 1.000000e+00 : f32
    %23 = vector.broadcast %cst_8 : f32 to vector<8x512xf32>
    %24 = arith.subf %23, %22 : vector<8x512xf32>
    %25 = arith.mulf %24, %24 : vector<8x512xf32>
    %26 = arith.mulf %25, %19 : vector<8x512xf32>
    %c2_i32_9 = arith.constant 2 : i32
    %27 = arith.cmpi slt, %4, %c2_i32_9 : i32
    %28 = arith.extui %27 : i1 to i32
    %c0_i32_10 = arith.constant 0 : i32
    %29 = arith.cmpi ne, %28, %c0_i32_10 : i32
    scf.if %29 {
      %c0_13 = arith.constant 0 : index
      %c0_14 = arith.constant 0 : index
      %33 = vector.load %arg4[%c0_13, %c0_14] : memref<8x512xf32, #tpu.memory_space<vmem>>, vector<8x512xf32>
      %34 = vector.shape_cast %26 : vector<8x512xf32> to vector<1x8x512xf32>
      %cst_15 = arith.constant dense<0.000000e+00> : vector<8x512xf32>
      %35 = vector.multi_reduction <add>, %34, %cst_15 [0] : vector<1x8x512xf32> to vector<8x512xf32>
      %36 = arith.addf %33, %35 : vector<8x512xf32>
      %c0_16 = arith.constant 0 : index
      %c0_17 = arith.constant 0 : index
      %37 = vector.load %arg4[%c0_16, %c0_17] : memref<8x512xf32, #tpu.memory_space<vmem>>, vector<8x512xf32>
      tpu.vector_store %arg4[%c0_16, %c0_17], %36 {strides = array<i32>} : memref<8x512xf32, #tpu.memory_space<vmem>>, vector<8x512xf32>,
    } else {
    }
    %c2_i32_11 = arith.constant 2 : i32
    %30 = arith.cmpi sge, %4, %c2_i32_11 : i32
    %31 = arith.extui %30 : i1 to i32
    %c0_i32_12 = arith.constant 0 : i32
    %32 = arith.cmpi ne, %31, %c0_i32_12 : i32
    scf.if %32 {
      %33 = tpu.iota {dimensions = array<i32: 0>} : vector<8x512xi32>
      %c8_i32 = arith.constant 8 : i32
      %34 = arith.muli %4, %c8_i32 : i32
      %35 = vector.broadcast %34 : i32 to vector<8x512xi32>
      %36 = arith.addi %35, %33 : vector<8x512xi32>
      %c24_i32 = arith.constant 24 : i32
      %37 = vector.broadcast %c24_i32 : i32 to vector<8x512xi32>
      %38 = arith.cmpi slt, %36, %37 : vector<8x512xi32>
      %c0_13 = arith.constant 0 : index
      %c0_14 = arith.constant 0 : index
      %39 = vector.load %arg4[%c0_13, %c0_14] : memref<8x512xf32, #tpu.memory_space<vmem>>, vector<8x512xf32>
      %cst_15 = arith.constant 0.000000e+00 : f32
      %40 = vector.broadcast %cst_15 : f32 to vector<8x512xf32>
      %41 = arith.select %38, %26, %40 : vector<8x512xi1>, vector<8x512xf32>
      %42 = vector.shape_cast %41 : vector<8x512xf32> to vector<1x8x512xf32>
      %cst_16 = arith.constant dense<0.000000e+00> : vector<8x512xf32>
      %43 = vector.multi_reduction <add>, %42, %cst_16 [0] : vector<1x8x512xf32> to vector<8x512xf32>
      %44 = arith.addf %39, %43 : vector<8x512xf32>
      %c0_17 = arith.constant 0 : index
      %c0_18 = arith.constant 0 : index
      %45 = vector.load %arg4[%c0_17, %c0_18] : memref<8x512xf32, #tpu.memory_space<vmem>>, vector<8x512xf32>
      tpu.vector_store %arg4[%c0_17, %c0_18], %44 {strides = array<i32>} : memref<8x512xf32, #tpu.memory_space<vmem>>, vector<8x512xf32>,
    } else {
    }
    return
  }
  func.func @transform_0(%arg0: i32, %arg1: i32) -> (i32, i32) {
    %c2_i32 = arith.constant 2 : i32
    %0 = arith.muli %arg0, %c2_i32 : i32
    %1 = arith.addi %0, %arg1 : i32
    %c2_i32_0 = arith.constant 2 : i32
    %2 = arith.minsi %1, %c2_i32_0 : i32
    %c0_i32 = arith.constant 0 : i32
    %c0_i32_1 = arith.constant 0 : i32
    return %2, %c0_i32 : i32, i32
  }
  func.func @transform_1(%arg0: i32, %arg1: i32) -> (i32, i32) {
    %c2_i32 = arith.constant 2 : i32
    %0 = arith.muli %arg0, %c2_i32 : i32
    %1 = arith.addi %0, %arg1 : i32
    %c2_i32_0 = arith.constant 2 : i32
    %2 = arith.minsi %1, %c2_i32_0 : i32
    %c0_i32 = arith.constant 0 : i32
    %c0_i32_1 = arith.constant 0 : i32
    return %2, %c0_i32 : i32, i32
  }
  func.func @transform_2(%arg0: i32, %arg1: i32) -> (i32, i32) {
    %c0_i32 = arith.constant 0 : i32
    %c0_i32_0 = arith.constant 0 : i32
    return %arg0, %c0_i32 : i32, i32
  }
}

</mosaic_0001>

<llo_original>
// kernel: tpu_custom_call.1
$region0: #{tpu_custom_call.1}
  #allocation0 [shape = 'u32[]', space=smem, size = 0x4, offset = 0x4, fixed_abs, tag = 'smem constant byte address 0x4 - core index']
  #allocation1 [shape = 'u32[144,128]{1,0:T(1,128)}', space=vmem, size = 0x12000, scoped, tag = 'internal scratch']
  %s0 = inlined_call_operand.hbm [shape: f32[24,512], index: 0, kind: input, shape index: {}]
  %s1 = inlined_call_operand.hbm [shape: f32[24,512], index: 1, kind: input, shape index: {}]
  %s2 = inlined_call_operand.hbm [shape: f32[16,512], index: 2, kind: output, shape index: {}]
  %s3 = sld [smem:[#allocation0]]
  $region61: #{tpu_custom_call.1} parent=0
    _
  %s5 = ssub.s32 1, %s3
  %s6 = scalar_select 0, %s5, %s3
  $region1: #{tpu_custom_call.1} parent=0
    #allocation2 [shape = 'u8[32768]{0}', space=vmem, size = 0x8000, scoped, tag = 'input window, operand 0']
    #allocation3 [shape = 's32[2]{0}', space=sflag, size = 0x8, scoped, tag = 'scoped memory for tpu_custom_call.1']
    #allocation4 [shape = 's32[2]{0}', space=sflag, size = 0x8, scoped, tag = 'scoped memory for tpu_custom_call.1']
    #allocation5 [shape = 'u8[32768]{0}', space=vmem, size = 0x8000, scoped, tag = 'input window, operand 1']
    #allocation6 [shape = 's32[2]{0}', space=sflag, size = 0x8, scoped, tag = 'scoped memory for tpu_custom_call.1']
    #allocation7 [shape = 'u8[32768]{0}', space=vmem, size = 0x8000, scoped, tag = 'output window, operand 0']
    %7 = vsyncpa [#allocation3], 0
    %s8 = scalar_lea.sflag [#allocation3], 1
    %9 = vsyncpa %s8, 0
    %10 = vsyncpa [#allocation6], 0
    %s11 = scalar_lea.sflag [#allocation6], 1
    %12 = vsyncpa %s11, 0
    %13 = vsyncpa [#allocation4], 0
    %s14 = scalar_lea.sflag [#allocation4], 1
    %15 = vsyncpa %s14, 0
    loop: start=0, step=1, limit=6
    $region2: #{tpu_custom_call.1} parent=1 // loop_pre_header
      _
    $region3: #{tpu_custom_call.1} parent=1 // loop_header
      %s17 = sphi 0, %s21
      %p18 = scmp.ge.s32.totalorder %s17, 6
      %s24 = sphi 0, %s36
      %s25 = sphi 0, %s32
      %s26 = sphi 0, %s24
      %s27 = sphi 0, %s25
      %s28 = sphi 0, %s26
      %s29 = sphi 0, %s27
      %s47 = sphi 0, %s49
      %s50 = sphi 0, %s47
      %s51 = sphi 0, %s50
      %s67 = sphi 0, %s51
      %s81 = sphi 0, %s83
      %s84 = sphi 0, %s81
      %s85 = sphi 0, %s84
      %s101 = sphi 0, %s85
      %s107 = sphi 0, %s109
      %s110 = sphi 0, %s107
      %s111 = sphi 0, %s110
      %s127 = sphi 0, %s111
    $region4: #{tpu_custom_call.1} parent=1 // loop_header_branch
      %20 = sbr.rel (%p18) target = $region8
    $region5: #{tpu_custom_call.1} parent=1 // loop_body
      %s22 = ssub.s32 %s17, 1
      %s23 = ssub.s32 %s17, 2
      %s30 = sadd.s32 1, %s25
      %p31 = scmp.ge.s32.totalorder %s30, 2
      %s32 = scalar_select %p31, 0, %s30
      %s33 = sadd.s32 1, %s24
      %s34 = scalar_select %p31, %s33, %s24
      %p35 = scmp.ge.s32.totalorder %s34, 2
      %s36 = scalar_select %p35, 0, %s34
      %s37 = smul.u32 %s24, 2
      %s38 = sadd.s32 %s37, %s25
      %p39 = scmp.lt.s32.totalorder %s38, 2
      %s40 = scalar_select %p39, %s38, 2
      %s41 = smul.u32 %s36, 2
      %s42 = sadd.s32 %s41, %s32
      %p43 = scmp.lt.s32.totalorder %s42, 2
      %s44 = scalar_select %p43, %s42, 2
      %s45 = ssub.s32 %s40, %s44
      %p46 = scmp.eq.s32.totalorder %s45, 0
      %s48 = sadd.s32 %s47, 1
      %s49 = scalar_select %p46, %s47, %s48
      %p52 = pneg %p46
      %p53 = scmp.eq.s32.totalorder %s17, 3
      %p54 = por %p52, %p53
      %p55 = scmp.ne.s32.totalorder %s47, %s50
      %p56 = scmp.eq.s32.totalorder %s17, 0
      %p57 = por %p55, %p56
      %p58 = scmp.ne.s32.totalorder %s47, %s50
      %p59 = scmp.eq.s32.totalorder %s22, 3
      %p60 = por %p58, %p59
      %p61 = scmp.ne.s32.totalorder %s50, %s51
      %p62 = scmp.eq.s32.totalorder %s22, 0
      %p63 = por %p61, %p62
      %p64 = scmp.ne.s32.totalorder %s50, %s51
      %p65 = scmp.eq.s32.totalorder %s23, 3
      %p66 = por %p64, %p65
      %p68 = scmp.ne.s32.totalorder %s51, %s67
      %p69 = scmp.eq.s32.totalorder %s23, 0
      %p70 = por %p68, %p69
      %s71 = smul.u32 %s24, 2
      %s72 = sadd.s32 %s71, %s25
      %p73 = scmp.lt.s32.totalorder %s72, 2
      %s74 = scalar_select %p73, %s72, 2
      %s75 = smul.u32 %s36, 2
      %s76 = sadd.s32 %s75, %s32
      %p77 = scmp.lt.s32.totalorder %s76, 2
      %s78 = scalar_select %p77, %s76, 2
      %s79 = ssub.s32 %s74, %s78
      %p80 = scmp.eq.s32.totalorder %s79, 0
      %s82 = sadd.s32 %s81, 1
      %s83 = scalar_select %p80, %s81, %s82
      %p86 = pneg %p80
      %p87 = scmp.eq.s32.totalorder %s17, 3
      %p88 = por %p86, %p87
      %p89 = scmp.ne.s32.totalorder %s81, %s84
      %p90 = scmp.eq.s32.totalorder %s17, 0
      %p91 = por %p89, %p90
      %p92 = scmp.ne.s32.totalorder %s81, %s84
      %p93 = scmp.eq.s32.totalorder %s22, 3
      %p94 = por %p92, %p93
      %p95 = scmp.ne.s32.totalorder %s84, %s85
      %p96 = scmp.eq.s32.totalorder %s22, 0
      %p97 = por %p95, %p96
      %p98 = scmp.ne.s32.totalorder %s84, %s85
      %p99 = scmp.eq.s32.totalorder %s23, 3
      %p100 = por %p98, %p99
      %p102 = scmp.ne.s32.totalorder %s85, %s101
      %p103 = scmp.eq.s32.totalorder %s23, 0
      %p104 = por %p102, %p103
      %s105 = ssub.s32 %s24, %s36
      %p106 = scmp.eq.s32.totalorder %s105, 0
      %s108 = sadd.s32 %s107, 1
      %s109 = scalar_select %p106, %s107, %s108
      %p112 = pneg %p106
      %p113 = scmp.eq.s32.totalorder %s17, 3
      %p114 = por %p112, %p113
      %p115 = scmp.ne.s32.totalorder %s107, %s110
      %p116 = scmp.eq.s32.totalorder %s17, 0
      %p117 = por %p115, %p116
      %p118 = scmp.ne.s32.totalorder %s107, %s110
      %p119 = scmp.eq.s32.totalorder %s22, 3
      %p120 = por %p118, %p119
      %p121 = scmp.ne.s32.totalorder %s110, %s111
      %p122 = scmp.eq.s32.totalorder %s22, 0
      %p123 = por %p121, %p122
      %p124 = scmp.ne.s32.totalorder %s110, %s111
      %p125 = scmp.eq.s32.totalorder %s23, 3
      %p126 = por %p124, %p125
      %p128 = scmp.ne.s32.totalorder %s111, %s127
      %p129 = scmp.eq.s32.totalorder %s23, 0
      %p130 = por %p128, %p129
      %p131 = scmp.le.s32.totalorder 1, %s17
      %p132 = scmp.lt.s32.totalorder %s17, 5
      %p133 = pnand %p131, %p132
      %p134 = pneg %p133
      // Predicated region
      $region9: #{tpu_custom_call.1} parent=5 // pred_check
        _
      $region10: #{tpu_custom_call.1} parent=5 // pred_check_branch
        %136 = sbr.rel (%p133) target = $region12
      $region11: #{tpu_custom_call.1} parent=5 // pred_region
        %s137 = ssub.s32 %s17, 1
      $region12: #{tpu_custom_call.1} parent=5 // pred_fallthru
        _
      %p138 = scmp.lt.s32.totalorder %s17, 4
      // Predicated region
      $region13: #{tpu_custom_call.1} parent=5 // pred_check
        %p139 = pneg %p138
      $region14: #{tpu_custom_call.1} parent=5 // pred_check_branch
        %141 = sbr.rel (%p139) target = $region16
      $region15: #{tpu_custom_call.1} parent=5 // pred_region
        // Predicated region
        $region17: #{tpu_custom_call.1} parent=15 // pred_check
          %p142 = pneg %p57
        $region18: #{tpu_custom_call.1} parent=15 // pred_check_branch
          %144 = sbr.rel (%p142) target = $region20
        $region19: #{tpu_custom_call.1} parent=15 // pred_region
          %s145 = sand.u32 %s47, 1
          %s146 = scalar_lea.sflag [#allocation3], %s145
          %s147 = sand.u32 %s47, 1
          %s148 = smul.addr %s147, 32
          %s149 = scalar_lea.vmem [#allocation2], %s148
          %s150 = smul.u32 %s24, 2
          %s151 = sadd.s32 %s150, %s25
          %p152 = scmp.lt.s32.totalorder %s151, 2
          %s153 = scalar_select %p152, %s151, 2
          %s155 = ssub.s32 512, 512
          %156 = vsyncadd %s146, %s155
          %s157 = smul.addr %s153, 4
          %s158 = smul.addr %s157, 128
          %s159 = scalar_lea.hbm %s0, %s158
          %s161 = sshll.u32 %s149, 4
          %s162 = int_to_ptr.vmem [resolvable:$true] %s161
          %164 = dma.hbm_to_vmem [thread:$0]  %s159, 512, %s162, %s146
        $region20: #{tpu_custom_call.1} parent=15 // pred_fallthru
          _
        // Predicated region
        $region21: #{tpu_custom_call.1} parent=15 // pred_check
          %p165 = pneg %p91
        $region22: #{tpu_custom_call.1} parent=15 // pred_check_branch
          %167 = sbr.rel (%p165) target = $region24
        $region23: #{tpu_custom_call.1} parent=15 // pred_region
          %s168 = sand.u32 %s81, 1
          %s169 = scalar_lea.sflag [#allocation6], %s168
          %s170 = sand.u32 %s81, 1
          %s171 = smul.addr %s170, 32
          %s172 = scalar_lea.vmem [#allocation5], %s171
          %s173 = smul.u32 %s24, 2
          %s174 = sadd.s32 %s173, %s25
          %p175 = scmp.lt.s32.totalorder %s174, 2
          %s176 = scalar_select %p175, %s174, 2
          %s178 = ssub.s32 512, 512
          %179 = vsyncadd %s169, %s178
          %s180 = smul.addr %s176, 4
          %s181 = smul.addr %s180, 128
          %s182 = scalar_lea.hbm %s1, %s181
          %s184 = sshll.u32 %s172, 4
          %s185 = int_to_ptr.vmem [resolvable:$true] %s184
          %187 = dma.hbm_to_vmem [thread:$0]  %s182, 512, %s185, %s169
        $region24: #{tpu_custom_call.1} parent=15 // pred_fallthru
          _
      $region16: #{tpu_custom_call.1} parent=5 // pred_fallthru
        _
      %p188 = scmp.le.s32.totalorder 1, %s17
      %p189 = scmp.lt.s32.totalorder %s17, 5
      %p190 = pnand %p188, %p189
      %p191 = pneg %p190
      // Predicated region
      $region25: #{tpu_custom_call.1} parent=5 // pred_check
        _
      $region26: #{tpu_custom_call.1} parent=5 // pred_check_branch
        %193 = sbr.rel (%p190) target = $region28
      $region27: #{tpu_custom_call.1} parent=5 // pred_region
        %s194 = ssub.s32 %s17, 1
        %s195 = sand.u32 %s50, 1
        %s196 = scalar_lea.sflag [#allocation3], %s195
        %s197 = sand.u32 %s50, 1
        %s198 = smul.addr %s197, 32
        %s199 = scalar_lea.vmem [#allocation2], %s198
        // Predicated region
        $region29: #{tpu_custom_call.1} parent=27 // pred_check
          %p200 = pneg %p63
        $region30: #{tpu_custom_call.1} parent=27 // pred_check_branch
          %202 = sbr.rel (%p200) target = $region32
        $region31: #{tpu_custom_call.1} parent=27 // pred_region
          %203 = dma.done %s196, 512
        $region32: #{tpu_custom_call.1} parent=27 // pred_fallthru
          _
        %s204 = sand.u32 %s84, 1
        %s205 = scalar_lea.sflag [#allocation6], %s204
        %s206 = sand.u32 %s84, 1
        %s207 = smul.addr %s206, 32
        %s208 = scalar_lea.vmem [#allocation5], %s207
        // Predicated region
        $region33: #{tpu_custom_call.1} parent=27 // pred_check
          %p209 = pneg %p97
        $region34: #{tpu_custom_call.1} parent=27 // pred_check_branch
          %211 = sbr.rel (%p209) target = $region36
        $region35: #{tpu_custom_call.1} parent=27 // pred_region
          %212 = dma.done %s205, 512
        $region36: #{tpu_custom_call.1} parent=27 // pred_fallthru
          _
        %s213 = sand.u32 %s50, 1
        %s214 = scalar_lea.sflag [#allocation3], %s213
        %s215 = sand.u32 %s50, 1
        %s216 = smul.addr %s215, 32
        %s217 = scalar_lea.vmem [#allocation2], %s216
        %p218 = pneg %p63
        %p219 = pneg %p60
        %s220 = sand.u32 %s84, 1
        %s221 = scalar_lea.sflag [#allocation6], %s220
        %s222 = sand.u32 %s84, 1
        %s223 = smul.addr %s222, 32
        %s224 = scalar_lea.vmem [#allocation5], %s223
        %p225 = pneg %p97
        %p226 = pneg %p94
        %p227 = pneg %p123
        %p228 = pneg %p120
        %s229 = sand.u32 %s110, 1
        %s230 = scalar_lea.sflag [#allocation4], %s229
        %s231 = sand.u32 %s110, 1
        %s232 = smul.addr %s231, 32
        %s233 = scalar_lea.vmem [#allocation7], %s232
        %s234 = smul.u32 %s26, 2
        %s235 = sadd.s32 %s234, %s27
        %p236 = scmp.lt.s32.totalorder %s235, 2
        %s237 = scalar_select %p236, %s235, 2
        %s238 = smul.u32 %s26, 2
        %s239 = sadd.s32 %s238, %s27
        %p240 = scmp.lt.s32.totalorder %s239, 2
        %s241 = scalar_select %p240, %s239, 2
        %p242 = scmp.eq.s32.totalorder %s27, 0
        // Predicated region
        $region37: #{tpu_custom_call.1} parent=27 // pred_check
          %p243 = pneg %p242
        $region38: #{tpu_custom_call.1} parent=27 // pred_check_branch
          %245 = sbr.rel (%p243) target = $region40
        $region39: #{tpu_custom_call.1} parent=27 // pred_region
          %246 = vst [vmem:[%s233] sm:$0xff] 0.0
          %247 = vst [vmem:[%s233 + $0x8] sm:$0xff] 0.0
          %248 = vst [vmem:[%s233 + $0x10] sm:$0xff] 0.0
          %249 = vst [vmem:[%s233 + $0x18] sm:$0xff] 0.0
        $region40: #{tpu_custom_call.1} parent=27 // pred_fallthru
          _
        %s250 = smul.u32 %s26, 2
        %s251 = sadd.s32 %s250, %s27
        %v252 = vld [vmem:[%s199] sm:$0xff]
        %v253 = vld [vmem:[%s199 + $0x8] sm:$0xff]
        %v254 = vld [vmem:[%s199 + $0x10] sm:$0xff]
        %v255 = vld [vmem:[%s199 + $0x18] sm:$0xff]
        %v256 = vld [vmem:[%s208] sm:$0xff]
        %v257 = vld [vmem:[%s208 + $0x8] sm:$0xff]
        %v258 = vld [vmem:[%s208 + $0x10] sm:$0xff]
        %v259 = vld [vmem:[%s208 + $0x18] sm:$0xff]
        %v260 = vlog2.pop %v252
        %v261 = vmul.f32 %v260, 0.6931472
        %v262 = vlog2.pop %v253
        %v263 = vmul.f32 %v262, 0.6931472
        %v264 = vlog2.pop %v254
        %v265 = vmul.f32 %v264, 0.6931472
        %v266 = vlog2.pop %v255
        %v267 = vmul.f32 %v266, 0.6931472
        %v268 = vmax.f32 %v261, -100.0
        %v269 = vmax.f32 %v263, -100.0
        %v270 = vmax.f32 %v265, -100.0
        %v271 = vmax.f32 %v267, -100.0
        %v272 = vsub.f32 1.0, %v252
        %v273 = vsub.f32 1.0, %v253
        %v274 = vsub.f32 1.0, %v254
        %v275 = vsub.f32 1.0, %v255
        %v276 = vlog2.pop %v272
        %v277 = vmul.f32 %v276, 0.6931472
        %v278 = vlog2.pop %v273
        %v279 = vmul.f32 %v278, 0.6931472
        %v280 = vlog2.pop %v274
        %v281 = vmul.f32 %v280, 0.6931472
        %v282 = vlog2.pop %v275
        %v283 = vmul.f32 %v282, 0.6931472
        %v284 = vmax.f32 %v277, -100.0
        %v285 = vmax.f32 %v279, -100.0
        %v286 = vmax.f32 %v281, -100.0
        %v287 = vmax.f32 %v283, -100.0
        %v288 = vsub.f32 %v268, %v284
        %v289 = vsub.f32 %v269, %v285
        %v290 = vsub.f32 %v270, %v286
        %v291 = vsub.f32 %v271, %v287
        %v292 = vmul.f32 %v256, %v288
        %v293 = vmul.f32 %v257, %v289
        %v294 = vmul.f32 %v258, %v290
        %v295 = vmul.f32 %v259, %v291
        %v296 = vadd.f32 %v284, %v292
        %v297 = vadd.f32 %v285, %v293
        %v298 = vadd.f32 %v286, %v294
        %v299 = vadd.f32 %v287, %v295
        %v300 = vsub.f32 0.0, %v296
        %v301 = vsub.f32 0.0, %v297
        %v302 = vsub.f32 0.0, %v298
        %v303 = vsub.f32 0.0, %v299
        %v304 = vsub.f32 0.0, %v300
        %v305 = vsub.f32 0.0, %v301
        %v306 = vsub.f32 0.0, %v302
        %v307 = vsub.f32 0.0, %v303
        %v308 = vmul.f32 %v304, 1.442695
        %v309 = vpow.pop %v308
        %v310 = vmul.f32 %v305, 1.442695
        %v311 = vpow.pop %v310
        %v312 = vmul.f32 %v306, 1.442695
        %v313 = vpow.pop %v312
        %v314 = vmul.f32 %v307, 1.442695
        %v315 = vpow.pop %v314
        %v316 = vsub.f32 1.0, %v309
        %v317 = vsub.f32 1.0, %v311
        %v318 = vsub.f32 1.0, %v313
        %v319 = vsub.f32 1.0, %v315
        %v320 = vmul.f32 %v316, %v316
        %v321 = vmul.f32 %v317, %v317
        %v322 = vmul.f32 %v318, %v318
        %v323 = vmul.f32 %v319, %v319
        %v324 = vmul.f32 %v320, %v300
        %v325 = vmul.f32 %v321, %v301
        %v326 = vmul.f32 %v322, %v302
        %v327 = vmul.f32 %v323, %v303
        %p328 = scmp.lt.s32.totalorder %s251, 2
        // Predicated region
        $region41: #{tpu_custom_call.1} parent=27 // pred_check
          %p329 = pneg %p328
        $region42: #{tpu_custom_call.1} parent=27 // pred_check_branch
          %331 = sbr.rel (%p329) target = $region44
        $region43: #{tpu_custom_call.1} parent=27 // pred_region
          %v332 = vld [vmem:[%s233] sm:$0xff]
          %v333 = vld [vmem:[%s233 + $0x8] sm:$0xff]
          %v334 = vld [vmem:[%s233 + $0x10] sm:$0xff]
          %v335 = vld [vmem:[%s233 + $0x18] sm:$0xff]
          %v336 = vadd.f32 %v324, 0.0
          %v337 = vadd.f32 %v325, 0.0
          %v338 = vadd.f32 %v326, 0.0
          %v339 = vadd.f32 %v327, 0.0
          %v340 = vadd.f32 %v332, %v336
          %v341 = vadd.f32 %v333, %v337
          %v342 = vadd.f32 %v334, %v338
          %v343 = vadd.f32 %v335, %v339
          %344 = vst [vmem:[%s233] sm:$0xff] %v340
          %345 = vst [vmem:[%s233 + $0x8] sm:$0xff] %v341
          %346 = vst [vmem:[%s233 + $0x10] sm:$0xff] %v342
          %347 = vst [vmem:[%s233 + $0x18] sm:$0xff] %v343
        $region44: #{tpu_custom_call.1} parent=27 // pred_fallthru
          _
        %p348 = scmp.ge.s32.totalorder %s251, 2
        // Predicated region
        $region45: #{tpu_custom_call.1} parent=27 // pred_check
          %p349 = pneg %p348
        $region46: #{tpu_custom_call.1} parent=27 // pred_check_branch
          %351 = sbr.rel (%p349) target = $region48
        $region47: #{tpu_custom_call.1} parent=27 // pred_region
          %v352 = vlaneseq
          %v353 = vshrl.u32 %v352, 7
          %s354 = smul.u32 %s251, 8
          %v355 = vstv %s354
          %v356 = vadd.s32 %v355, %v353
          %vm357 = vcmp.lt.s32.totalorder %v356, 24
          %v358 = vld [vmem:[%s233] sm:$0xff]
          %v359 = vld [vmem:[%s233 + $0x8] sm:$0xff]
          %v360 = vld [vmem:[%s233 + $0x10] sm:$0xff]
          %v361 = vld [vmem:[%s233 + $0x18] sm:$0xff]
          %v362 = vsel %vm357, %v324, 0.0
          %v363 = vsel %vm357, %v325, 0.0
          %v364 = vsel %vm357, %v326, 0.0
          %v365 = vsel %vm357, %v327, 0.0
          %v366 = vadd.f32 %v362, 0.0
          %v367 = vadd.f32 %v363, 0.0
          %v368 = vadd.f32 %v364, 0.0
          %v369 = vadd.f32 %v365, 0.0
          %v370 = vadd.f32 %v358, %v366
          %v371 = vadd.f32 %v359, %v367
          %v372 = vadd.f32 %v360, %v368
          %v373 = vadd.f32 %v361, %v369
          %374 = vst [vmem:[%s233] sm:$0xff] %v370
          %375 = vst [vmem:[%s233 + $0x8] sm:$0xff] %v371
          %376 = vst [vmem:[%s233 + $0x10] sm:$0xff] %v372
          %377 = vst [vmem:[%s233 + $0x18] sm:$0xff] %v373
        $region48: #{tpu_custom_call.1} parent=27 // pred_fallthru
          _
        %s378 = sand.u32 %s110, 1
        %s379 = scalar_lea.sflag [#allocation4], %s378
        %s380 = sand.u32 %s110, 1
        %s381 = smul.addr %s380, 32
        %s382 = scalar_lea.vmem [#allocation7], %s381
        // Predicated region
        $region49: #{tpu_custom_call.1} parent=27 // pred_check
          %p383 = pneg %p120
        $region50: #{tpu_custom_call.1} parent=27 // pred_check_branch
          %385 = sbr.rel (%p383) target = $region52
        $region51: #{tpu_custom_call.1} parent=27 // pred_region
          %s387 = ssub.s32 512, 512
          %388 = vsyncadd %s379, %s387
          %s389 = smul.addr %s26, 4
          %s390 = smul.addr %s389, 128
          %s391 = scalar_lea.hbm %s2, %s390
          %s393 = sshll.u32 %s382, 4
          %s394 = int_to_ptr.vmem [resolvable:$true] %s393
          %396 = dma.vmem_to_hbm [thread:$0]  %s394, 512, %s391, %s379
        $region52: #{tpu_custom_call.1} parent=27 // pred_fallthru
          _
      $region28: #{tpu_custom_call.1} parent=5 // pred_fallthru
        _
      %p397 = scmp.le.s32.totalorder 2, %s17
      // Predicated region
      $region53: #{tpu_custom_call.1} parent=5 // pred_check
        %p398 = pneg %p397
      $region54: #{tpu_custom_call.1} parent=5 // pred_check_branch
        %400 = sbr.rel (%p398) target = $region56
      $region55: #{tpu_custom_call.1} parent=5 // pred_region
        %s401 = ssub.s32 %s17, 2
        // Predicated region
        $region57: #{tpu_custom_call.1} parent=55 // pred_check
          %p402 = pneg %p126
        $region58: #{tpu_custom_call.1} parent=55 // pred_check_branch
          %404 = sbr.rel (%p402) target = $region60
        $region59: #{tpu_custom_call.1} parent=55 // pred_region
          %s405 = sand.u32 %s111, 1
          %s406 = scalar_lea.sflag [#allocation4], %s405
          %s407 = sand.u32 %s111, 1
          %s408 = smul.addr %s407, 32
          %s409 = scalar_lea.vmem [#allocation7], %s408
          %410 = dma.done %s406, 512
        $region60: #{tpu_custom_call.1} parent=55 // pred_fallthru
          _
      $region56: #{tpu_custom_call.1} parent=5 // pred_fallthru
        _
    $region6: #{tpu_custom_call.1} parent=1 // loop_footer
      %s21 = sadd.s32 1, %s17
    $region7: #{tpu_custom_call.1} parent=1 // loop_footer_branch
      %16 = sbr.rel target = $region3
    $region8: #{tpu_custom_call.1} parent=1 // loop_exit
      _
    %411 = vsyncpa [#allocation3], 1
    %s412 = scalar_lea.sflag [#allocation3], 1
    %413 = vsyncpa %s412, 1
    %414 = vsyncpa [#allocation6], 1
    %s415 = scalar_lea.sflag [#allocation6], 1
    %416 = vsyncpa %s415, 1
    %417 = vsyncpa [#allocation4], 1
    %s418 = scalar_lea.sflag [#allocation4], 1
    %419 = vsyncpa %s418, 1

</llo_original>
